<compile_context>
chip_gen: v6e
topology: v6e:2x2x1
jax: 0.10.0
libtpu: 0.0.40
codegen_flags: <defaults>
</compile_context>

<pallas_src>
import jax
import jax.numpy as jnp
from jax.experimental import pallas as pl
from jax.experimental.pallas import tpu as pltpu

DIM_H = 32
NUM_HEADS = 4
HEAD_DIM = DIM_H // NUM_HEADS
BN_EPS = 1e-5


def _round_up(a, b):
    return (a + b - 1) // b * b


# ---------------------------------------------------------------------------
# BatchNorm helpers (batch statistics, biased variance)
# ---------------------------------------------------------------------------
def _bn(x, gamma, beta):
    mean = jnp.mean(x, axis=0, keepdims=True)
    var = jnp.mean((x - mean) ** 2, axis=0, keepdims=True)
    return gamma * (x - mean) * jax.lax.rsqrt(var + BN_EPS) + beta


def _bn_affine(x, gamma, beta):
    """Fold BN with batch stats into y = a*x + b (exact)."""
    mean = jnp.mean(x, axis=0, keepdims=True)
    var = jnp.mean((x - mean) ** 2, axis=0, keepdims=True)
    rstd = jax.lax.rsqrt(var + BN_EPS)
    return gamma * rstd, beta - gamma * mean * rstd


# ---------------------------------------------------------------------------
# Kernel 1: local GIN branch, pre-norm residual.
#   GINConv(eps=0): z_i = h_i + sum_{j->i} h_j ; m = W2 relu(W1 z + b1) + b2
#   output r = h + m   (dropout p = 0)
# Grid: (row tiles [parallel], src tiles [arbitrary/reduction]).
# adj and h_src are bf16 -> native bf16 MXU matmul, f32 accumulation.
# ---------------------------------------------------------------------------
def gin_local_kernel(h_row_ref, adj_ref, h_src_ref, w1_ref, b1_ref,
                     w2_ref, b2_ref, out_ref, acc_ref):
    k = pl.program_id(1)

    @pl.when(k == 0)
    def _():
        acc_ref[...] = jnp.zeros_like(acc_ref)

    # bf16 x bf16 -> f32 accumulate: single native MXU pass, no VPU upcast.
    acc_ref[...] += jnp.dot(adj_ref[...], h_src_ref[...],
                            preferred_element_type=jnp.float32)

    @pl.when(k == pl.num_programs(1) - 1)
    def _():
        h = h_row_ref[...]                                    # f32 residual path
        z = h + acc_ref[...]                                  # eps = 0
        m = jnp.maximum(
            jnp.dot(z, w1_ref[...], preferred_element_type=jnp.float32)
            + b1_ref[...], 0.0)
        m = jnp.dot(m, w2_ref[...], preferred_element_type=jnp.float32) + b2_ref[...]
        out_ref[...] = h + m                                  # pre-BN residual
        # TODO(synk): lane-dense (TM//4, 128) output slab (output traffic here is
        # negligible vs adj bytes, so kept at (TM, 32) to avoid an in-kernel relayout).


# ---------------------------------------------------------------------------
# Kernel 2: global attention (torch MultiheadAttention, batch_first=True),
# GB graphs per grid step.  Per-head weights arrive as stacked refs so head
# handling needs no activation lane-slicing and no concatenation; the softmax
# scale is pre-folded into wq; the key-padding bias is broadcast once.
# ---------------------------------------------------------------------------
def mha_kernel(x_ref, bias_ref, wq_ref, bq_ref, wk_ref, bk_ref,
               wv_ref, bv_ref, wo_ref, bo_ref, out_ref):
    GB, S, D = x_ref.shape

    x2 = x_ref[...].reshape(GB * S, D)
    bias = jnp.broadcast_to(bias_ref[...], (GB, S, S))        # hoisted once

    acc = jnp.zeros((GB * S, D), jnp.float32)
    for h in range(NUM_HEADS):                                # unrolled, static ref slices
        q = (jnp.dot(x2, wq_ref[h], preferred_element_type=jnp.float32)
             + bq_ref[h]).reshape(GB, S, HEAD_DIM)            # scale already folded
        k = (jnp.dot(x2, wk_ref[h], preferred_element_type=jnp.float32)
             + bk_ref[h]).reshape(GB, S, HEAD_DIM)
        v = (jnp.dot(x2, wv_ref[h], preferred_element_type=jnp.float32)
             + bv_ref[h]).reshape(GB, S, HEAD_DIM)
        s = jnp.einsum('gqd,gkd->gqk', q, k,
                       preferred_element_type=jnp.float32) + bias
        s = s - jnp.max(s, axis=-1, keepdims=True)            # keeps padded rows finite
        e = jnp.exp(s)
        p = e * pl.reciprocal(jnp.sum(e, axis=-1, keepdims=True), approx=True)
        o = jnp.einsum('gqk,gkd->gqd', p, v, preferred_element_type=jnp.float32)
        # fold head output straight through its W_o row block (ref slice, free)
        acc = acc + jnp.dot(o.reshape(GB * S, HEAD_DIM), wo_ref[h],
                            preferred_element_type=jnp.float32)
    out_ref[...] = (acc + bo_ref[...]).reshape(GB, S, D)
    # TODO(synk): for large S, tile the key axis flash-style instead of
    # materializing (GB, S, S) scores.


# ---------------------------------------------------------------------------
# Kernel 3: row-tiled combine.  BN(local) / BN(attn residual) as precomputed
# affine maps, branch sum, FFN (+residual).  Output is pre-final-norm h2.
# ---------------------------------------------------------------------------
def combine_ffn_kernel(r_local_ref, t_ref, al_ref, bl_ref, aa_ref, ba_ref,
                       wf1_ref, bf1_ref, wf2_ref, bf2_ref, h2_ref):
    h_local = al_ref[...] * r_local_ref[...] + bl_ref[...]
    h_attn = aa_ref[...] * t_ref[...] + ba_ref[...]
    h = h_local + h_attn                                      # sum of branch outputs
    ff = jnp.maximum(
        jnp.dot(h, wf1_ref[...], preferred_element_type=jnp.float32) + bf1_ref[...],
        0.0)
    ff = jnp.dot(ff, wf2_ref[...], preferred_element_type=jnp.float32) + bf2_ref[...]
    h2_ref[...] = h + ff


# ---------------------------------------------------------------------------
# Kernel 4: final BatchNorm as an affine map on a lane-dense (rows, 128) slab
# (contiguous reinterpretation of the (N, 32) layout -> unmasked vector stores).
# ---------------------------------------------------------------------------
def affine_kernel(x_ref, a_ref, b_ref, o_ref):
    o_ref[...] = a_ref[...] * x_ref[...] + b_ref[...]


# ---------------------------------------------------------------------------
# Wrapper (glue: padding, dense-batch construction, BN stats, parameter plumbing)
# ---------------------------------------------------------------------------
def gps_layer_forward(x, edge_index, batch_vec, params, num_graphs, max_nodes):
    N, D = x.shape
    G, S = num_graphs, max_nodes
    NH, HD = NUM_HEADS, HEAD_DIM

    # ----- local GIN branch: tiled over (row tiles, src tiles) -----
    if N <= 256:
        N_pad = _round_up(N, 8)
        TM = TK = N_pad                       # whole-array tiles at small N
    else:
        TM = 256
        TK = 2048 if N > 8192 else 1024       # HBM-bound stage: big src tiles
        N_pad = _round_up(N, TK)              # TK is a multiple of TM

    x_pad = jnp.pad(x, ((0, N_pad - N), (0, 0)))
    x_pad_bf16 = x_pad.astype(jnp.bfloat16)
    # Dense adjacency (adj[dst, src] = multiplicity), built directly in bf16
    # (exact for integer multiplicities <= 256); halves HBM bytes of the
    # dominant stage.  TODO(synk): CSR/edge-list gather via scalar prefetch
    # for E << N^2.
    adj = (jnp.zeros((N_pad, N_pad), jnp.bfloat16)
           .at[edge_index[1], edge_index[0]]
           .add(jnp.ones((edge_index.shape[1],), jnp.bfloat16)))

    r_local_pad = pl.pallas_call(
        gin_local_kernel,
        out_shape=jax.ShapeDtypeStruct((N_pad, D), jnp.float32),
        grid=(N_pad // TM, N_pad // TK),
        in_specs=[
            pl.BlockSpec((TM, D), lambda i, k: (i, 0)),       # h (row tile, f32)
            pl.BlockSpec((TM, TK), lambda i, k: (i, k)),      # adj tile (bf16)
            pl.BlockSpec((TK, D), lambda i, k: (k, 0)),       # h (src tile, bf16)
            pl.BlockSpec((D, D), lambda i, k: (0, 0)),        # gin_w1
            pl.BlockSpec((1, D), lambda i, k: (0, 0)),        # gin_b1
            pl.BlockSpec((D, D), lambda i, k: (0, 0)),        # gin_w2
            pl.BlockSpec((1, D), lambda i, k: (0, 0)),        # gin_b2
        ],
        out_specs=pl.BlockSpec((TM, D), lambda i, k: (i, 0)),
        scratch_shapes=[pltpu.VMEM((TM, D), jnp.float32)],
        # Tiles are <= ~2.5 MiB total -> fits the default scoped VMEM on
        # v5e/v6e/v7x; no explicit vmem_limit needed.
        compiler_params=pltpu.CompilerParams(
            dimension_semantics=("parallel", "arbitrary")),
    )(x_pad, adj, x_pad_bf16, params['gin_w1'], params['gin_b1'],
      params['gin_w2'], params['gin_b2'])
    r_local = r_local_pad[:N]                                  # drop padded rows

    # ----- to_dense_batch (glue) -----
    S_pad = _round_up(S, 8)
    # GB graphs per grid step: target ~512 KiB input block, cap in-kernel scores.
    GB = min(G, max(1, min((512 * 1024) // (S_pad * D * 4),
                           (2 << 20) // max(S_pad * S_pad * 4, 1))))
    G_pad = _round_up(G, GB)
    sizes = jax.ops.segment_sum(jnp.ones((N,), jnp.int32), batch_vec,
                                num_segments=G)
    starts = jnp.concatenate(
        [jnp.zeros((1,), jnp.int32), jnp.cumsum(sizes)[:-1]])
    pos = jnp.arange(N, dtype=jnp.int32) - starts[batch_vec]
    h_dense = jnp.zeros((G_pad, S_pad, D), jnp.float32).at[batch_vec, pos].set(x)
    mask = jnp.zeros((G_pad, S_pad), bool).at[batch_vec, pos].set(True)
    attn_bias = jnp.where(mask, 0.0, -1e30).astype(jnp.float32)[:, None, :]

    # Per-head weight stacks; softmax scale folded into Q projection (free).
    scale = 1.0 / (HD ** 0.5)
    wqkv, bqkv = params['wqkv'], params['bqkv']
    wq, wk, wv = wqkv[:, :D], wqkv[:, D:2 * D], wqkv[:, 2 * D:]
    bq, bk, bv = bqkv[:, :D], bqkv[:, D:2 * D], bqkv[:, 2 * D:]
    w_heads = lambda w: w.reshape(D, NH, HD).transpose(1, 0, 2)     # (NH, D, HD)
    b_heads = lambda b: b.reshape(1, NH, HD).transpose(1, 0, 2)     # (NH, 1, HD)
    wq_h, bq_h = w_heads(wq * scale), b_heads(bq * scale)
    wk_h, bk_h = w_heads(wk), b_heads(bk)
    wv_h, bv_h = w_heads(wv), b_heads(bv)
    wo_h = params['wo'].reshape(NH, HD, D)                          # (NH, HD, D)

    # ----- global attention branch (GB graphs per grid step) -----
    attn_dense = pl.pallas_call(
        mha_kernel,
        out_shape=jax.ShapeDtypeStruct((G_pad, S_pad, D), jnp.float32),
        grid=(G_pad // GB,),
        in_specs=[
            pl.BlockSpec((GB, S_pad, D), lambda g: (g, 0, 0)),
            pl.BlockSpec((GB, 1, S_pad), lambda g: (g, 0, 0)),
            pl.BlockSpec((NH, D, HD), lambda g: (0, 0, 0)),
            pl.BlockSpec((NH, 1, HD), lambda g: (0, 0, 0)),
            pl.BlockSpec((NH, D, HD), lambda g: (0, 0, 0)),
            pl.BlockSpec((NH, 1, HD), lambda g: (0, 0, 0)),
            pl.BlockSpec((NH, D, HD), lambda g: (0, 0, 0)),
            pl.BlockSpec((NH, 1, HD), lambda g: (0, 0, 0)),
            pl.BlockSpec((NH, HD, D), lambda g: (0, 0, 0)),
            pl.BlockSpec((1, D), lambda g: (0, 0)),
        ],
        out_specs=pl.BlockSpec((GB, S_pad, D), lambda g: (g, 0, 0)),
        compiler_params=pltpu.CompilerParams(dimension_semantics=("parallel",)),
    )(h_dense, attn_bias, wq_h, bq_h, wk_h, bk_h, wv_h, bv_h, wo_h, params['bo'])

    # dense -> node order, i.e. h_attn = attn(h_dense)[mask]
    # TODO(synk): fuse this gather into the combine kernel via scalar prefetch
    # to avoid the extra HBM round trip of the dense tensor.
    h_attn_nodes = attn_dense[batch_vec, pos]

    # ----- BN stats (exact, full node set) folded into affine maps (wrapper) -----
    t = x + h_attn_nodes                                       # attn residual input
    a_l, b_l = _bn_affine(r_local, params['bn_local_g'], params['bn_local_b'])
    a_a, b_a = _bn_affine(t, params['bn_attn_g'], params['bn_attn_b'])

    # ----- row-tiled combine + FFN (+residual) -----
    TM_C = _round_up(N, 8) if N <= 4096 else 2048
    N_padC = _round_up(N, TM_C)
    pad_rows = lambda a: jnp.pad(a, ((0, N_padC - N), (0, 0)))

    h2_pad = pl.pallas_call(
        combine_ffn_kernel,
        out_shape=jax.ShapeDtypeStruct((N_padC, D), jnp.float32),
        grid=(N_padC // TM_C,),
        in_specs=[
            pl.BlockSpec((TM_C, D), lambda i: (i, 0)),        # r_local tile
            pl.BlockSpec((TM_C, D), lambda i: (i, 0)),        # (x + h_attn) tile
            pl.BlockSpec((1, D), lambda i: (0, 0)),           # a_local
            pl.BlockSpec((1, D), lambda i: (0, 0)),           # b_local
            pl.BlockSpec((1, D), lambda i: (0, 0)),           # a_attn
            pl.BlockSpec((1, D), lambda i: (0, 0)),           # b_attn
            pl.BlockSpec((D, 2 * D), lambda i: (0, 0)),       # wf1
            pl.BlockSpec((1, 2 * D), lambda i: (0, 0)),       # bf1
            pl.BlockSpec((2 * D, D), lambda i: (0, 0)),       # wf2
            pl.BlockSpec((1, D), lambda i: (0, 0)),           # bf2
        ],
        out_specs=pl.BlockSpec((TM_C, D), lambda i: (i, 0)),
        compiler_params=pltpu.CompilerParams(dimension_semantics=("parallel",)),
    )(pad_rows(r_local), pad_rows(t), a_l, b_l, a_a, b_a,
      params['wf1'], params['bf1'], params['wf2'], params['bf2'])

    # ----- final BatchNorm: exact stats over real rows, lane-dense apply -----
    a2, b2 = _bn_affine(h2_pad[:N], params['bn2_g'], params['bn2_b'])
    slab = h2_pad.reshape(N_padC // 4, 4 * D)                  # contiguous (., 128) view
    a2_t = jnp.tile(a2, (1, 4))
    b2_t = jnp.tile(b2, (1, 4))
    TMS = TM_C // 4
    out_slab = pl.pallas_call(
        affine_kernel,
        out_shape=jax.ShapeDtypeStruct(slab.shape, jnp.float32),
        grid=(N_padC // TM_C,),
        in_specs=[
            pl.BlockSpec((TMS, 4 * D), lambda i: (i, 0)),
            pl.BlockSpec((1, 4 * D), lambda i: (0, 0)),
            pl.BlockSpec((1, 4 * D), lambda i: (0, 0)),
        ],
        out_specs=pl.BlockSpec((TMS, 4 * D), lambda i: (i, 0)),
        compiler_params=pltpu.CompilerParams(dimension_semantics=("parallel",)),
    )(slab, a2_t, b2_t)

    return out_slab.reshape(N_padC, D)[:N]


# ---------------------------------------------------------------------------
# Pure-JAX reference (same math, no Pallas) for a correctness check
# ---------------------------------------------------------------------------
def reference_forward(x, edge_index, batch_vec, params, num_graphs, max_nodes):
    N, D = x.shape
    G, S = num_graphs, max_nodes
    p = params
    adj = jnp.zeros((N, N), jnp.float32).at[edge_index[1], edge_index[0]].add(1.0)

    z = x + adj @ x
    m = jnp.maximum(z @ p['gin_w1'] + p['gin_b1'], 0.0) @ p['gin_w2'] + p['gin_b2']
    h_local = _bn(x + m, p['bn_local_g'], p['bn_local_b'])

    sizes = jax.ops.segment_sum(jnp.ones((N,), jnp.int32), batch_vec, num_segments=G)
    starts = jnp.concatenate([jnp.zeros((1,), jnp.int32), jnp.cumsum(sizes)[:-1]])
    pos = jnp.arange(N, dtype=jnp.int32) - starts[batch_vec]
    dense = jnp.zeros((G, S, D), jnp.float32).at[batch_vec, pos].set(x)
    mask = jnp.zeros((G, S), bool).at[batch_vec, pos].set(True)

    qkv = dense @ p['wqkv'] + p['bqkv']
    q, k, v = jnp.split(qkv, 3, axis=-1)
    heads = lambda t: t.reshape(G, S, NUM_HEADS, HEAD_DIM).transpose(0, 2, 1, 3)
    qh, kh, vh = heads(q), heads(k), heads(v)
    s = jnp.einsum('ghqd,ghkd->ghqk', qh, kh) / (HEAD_DIM ** 0.5)
    s = s + jnp.where(mask, 0.0, -1e30)[:, None, None, :]
    a = jax.nn.softmax(s, axis=-1)
    o = jnp.einsum('ghqk,ghkd->ghqd', a, vh).transpose(0, 2, 1, 3).reshape(G, S, D)
    y = o @ p['wo'] + p['bo']
    h_attn = _bn(x + y[batch_vec, pos], p['bn_attn_g'], p['bn_attn_b'])

    h = h_local + h_attn
    ff = jnp.maximum(h @ p['wf1'] + p['bf1'], 0.0) @ p['wf2'] + p['bf2']
    return _bn(h + ff, p['bn2_g'], p['bn2_b'])


# ---------------------------------------------------------------------------
def init_params(key):
    D = DIM_H
    ks = jax.random.split(key, 10)
    n = lambda k, shp: (0.1 * jax.random.normal(k, shp)).astype(jnp.float32)
    return {
        # GIN MLP
        'gin_w1': n(ks[0], (D, D)), 'gin_b1': n(ks[1], (1, D)),
        'gin_w2': n(ks[2], (D, D)), 'gin_b2': n(ks[3], (1, D)),
        'bn_local_g': jnp.ones((1, D), jnp.float32),
        'bn_local_b': jnp.zeros((1, D), jnp.float32),
        # MultiheadAttention
        'wqkv': n(ks[4], (D, 3 * D)), 'bqkv': n(ks[5], (1, 3 * D)),
        'wo': n(ks[6], (D, D)), 'bo': n(ks[7], (1, D)),
        'bn_attn_g': jnp.ones((1, D), jnp.float32),
        'bn_attn_b': jnp.zeros((1, D), jnp.float32),
        # Feed-forward
        'wf1': n(ks[8], (D, 2 * D)), 'bf1': jnp.zeros((1, 2 * D), jnp.float32),
        'wf2': n(ks[9], (2 * D, D)), 'bf2': jnp.zeros((1, D), jnp.float32),
        'bn2_g': jnp.ones((1, D), jnp.float32),
        'bn2_b': jnp.zeros((1, D), jnp.float32),
    }


if __name__ == "__main__":
    key = jax.random.PRNGKey(0)
    k_x, k_p = jax.random.split(key)

    # Two graphs with 6 and 8 nodes (S = max nodes = 8), dim_h = 32.
    sizes_py = [6, 8]
    num_graphs = len(sizes_py)
    max_nodes = max(sizes_py)
    N = sum(sizes_py)

    x = jax.random.normal(k_x, (N, DIM_H), jnp.float32)
    batch_vec = jnp.array(sum(([g] * s for g, s in enumerate(sizes_py)), []),
                          dtype=jnp.int32)

    # deterministic ring-ish edge list per graph (src -> dst)
    src, dst = [], []
    off = 0
    for s in sizes_py:
        for i in range(s):
            for d_ in (1, 2):
                src.append(off + i)
                dst.append(off + (i + d_) % s)
        off += s
    edge_index = jnp.array([src, dst], dtype=jnp.int32)

    params = init_params(k_p)

    out = gps_layer_forward(x, edge_index, batch_vec, params,
                            num_graphs, max_nodes)
    out = jax.block_until_ready(out)

    ref = reference_forward(x, edge_index, batch_vec, params,
                            num_graphs, max_nodes)
    ref = jax.block_until_ready(ref)

    assert out.shape == (N, DIM_H)
    assert jnp.allclose(out, ref, rtol=1e-2, atol=1e-2), \
        f"max abs err {jnp.max(jnp.abs(out - ref))}"

    print("KERNEL_OK")
</pallas_src>

<mosaic_0001>
module attributes {stable_mosaic.version = 11 : i64} {
  func.func @gin_local_kernel(%arg0: i32, %arg1: i32, %arg2: memref<16x32xf32, #tpu.memory_space<vmem>>, %arg3: memref<16x16xbf16, #tpu.memory_space<vmem>>, %arg4: memref<16x32xbf16, #tpu.memory_space<vmem>>, %arg5: memref<32x32xf32, #tpu.memory_space<vmem>>, %arg6: memref<1x32xf32, #tpu.memory_space<vmem>>, %arg7: memref<32x32xf32, #tpu.memory_space<vmem>>, %arg8: memref<1x32xf32, #tpu.memory_space<vmem>>, %arg9: memref<16x32xf32, #tpu.memory_space<vmem>>, %arg10: memref<16x32xf32, #tpu.memory_space<vmem>>) attributes {dimension_semantics = [#tpu.dimension_semantics<parallel>, #tpu.dimension_semantics<arbitrary>], iteration_bounds = array<i64: 1, 1>, scalar_prefetch = 0 : i64, scratch_operands = 1 : i64, tpu.core_type = #tpu.core_type<tc>, window_params = [{transform_indices = @transform_0, window_bounds = array<i64: 16, 32>}, {transform_indices = @transform_1, window_bounds = array<i64: 16, 16>}, {transform_indices = @transform_2, window_bounds = array<i64: 16, 32>}, {pipeline_mode = #tpu.pipeline_mode<synchronous>, transform_indices = @transform_3, window_bounds = array<i64: 32, 32>}, {pipeline_mode = #tpu.pipeline_mode<synchronous>, transform_indices = @transform_4, window_bounds = array<i64: 1, 32>}, {pipeline_mode = #tpu.pipeline_mode<synchronous>, transform_indices = @transform_5, window_bounds = array<i64: 32, 32>}, {pipeline_mode = #tpu.pipeline_mode<synchronous>, transform_indices = @transform_6, window_bounds = array<i64: 1, 32>}, {transform_indices = @transform_7, window_bounds = array<i64: 16, 32>}]} {
    %c0_i32 = arith.constant 0 : i32
    %0 = arith.cmpi eq, %arg1, %c0_i32 : i32
    %1 = arith.extui %0 : i1 to i32
    %c0_i32_0 = arith.constant 0 : i32
    %2 = arith.cmpi ne, %1, %c0_i32_0 : i32
    scf.if %2 {
      %cst_10 = arith.constant 0.000000e+00 : f32
      %12 = vector.broadcast %cst_10 : f32 to vector<16x32xf32>
      %c0_11 = arith.constant 0 : index
      %c0_12 = arith.constant 0 : index
      %13 = vector.load %arg10[%c0_11, %c0_12] : memref<16x32xf32, #tpu.memory_space<vmem>>, vector<16x32xf32>
      tpu.vector_store %arg10[%c0_11, %c0_12], %12 {strides = array<i32>} : memref<16x32xf32, #tpu.memory_space<vmem>>, vector<16x32xf32>,
    } else {
    }
    %c0 = arith.constant 0 : index
    %c0_1 = arith.constant 0 : index
    %3 = vector.load %arg10[%c0, %c0_1] : memref<16x32xf32, #tpu.memory_space<vmem>>, vector<16x32xf32>
    %c0_2 = arith.constant 0 : index
    %c0_3 = arith.constant 0 : index
    %4 = vector.load %arg3[%c0_2, %c0_3] : memref<16x16xbf16, #tpu.memory_space<vmem>>, vector<16x16xbf16>
    %c0_4 = arith.constant 0 : index
    %c0_5 = arith.constant 0 : index
    %5 = vector.load %arg4[%c0_4, %c0_5] : memref<16x32xbf16, #tpu.memory_space<vmem>>, vector<16x32xbf16>
    %cst = arith.constant dense<0.000000e+00> : vector<16x32xf32>
    %6 = tpu.matmul %4, %5, %cst {dimension_numbers = #tpu.dot_dimension_numbers<[1], [0], [0], [1], [0, 0, 1, 1], [], []>} : vector<16x16xbf16>, vector<16x32xbf16>, vector<16x32xf32> -> vector<16x32xf32>
    %7 = arith.addf %3, %6 : vector<16x32xf32>
    %c0_6 = arith.constant 0 : index
    %c0_7 = arith.constant 0 : index
    %8 = vector.load %arg10[%c0_6, %c0_7] : memref<16x32xf32, #tpu.memory_space<vmem>>, vector<16x32xf32>
    tpu.vector_store %arg10[%c0_6, %c0_7], %7 {strides = array<i32>} : memref<16x32xf32, #tpu.memory_space<vmem>>, vector<16x32xf32>,
    %c0_i32_8 = arith.constant 0 : i32
    %9 = arith.cmpi eq, %arg1, %c0_i32_8 : i32
    %10 = arith.extui %9 : i1 to i32
    %c0_i32_9 = arith.constant 0 : i32
    %11 = arith.cmpi ne, %10, %c0_i32_9 : i32
    scf.if %11 {
      %c0_10 = arith.constant 0 : index
      %c0_11 = arith.constant 0 : index
      %12 = vector.load %arg2[%c0_10, %c0_11] : memref<16x32xf32, #tpu.memory_space<vmem>>, vector<16x32xf32>
      %c0_12 = arith.constant 0 : index
      %c0_13 = arith.constant 0 : index
      %13 = vector.load %arg10[%c0_12, %c0_13] : memref<16x32xf32, #tpu.memory_space<vmem>>, vector<16x32xf32>
      %14 = arith.addf %12, %13 : vector<16x32xf32>
      %c0_14 = arith.constant 0 : index
      %c0_15 = arith.constant 0 : index
      %15 = vector.load %arg5[%c0_14, %c0_15] : memref<32x32xf32, #tpu.memory_space<vmem>>, vector<32x32xf32>
      %cst_16 = arith.constant dense<0.000000e+00> : vector<16x32xf32>
      %16 = tpu.matmul %14, %15, %cst_16 {dimension_numbers = #tpu.dot_dimension_numbers<[1], [0], [0], [1], [0, 0, 1, 1], [], []>} : vector<16x32xf32>, vector<32x32xf32>, vector<16x32xf32> -> vector<16x32xf32>
      %c0_17 = arith.constant 0 : index
      %c0_18 = arith.constant 0 : index
      %17 = vector.load %arg6[%c0_17, %c0_18] : memref<1x32xf32, #tpu.memory_space<vmem>>, vector<1x32xf32>
      %18 = vector.broadcast %17 : vector<1x32xf32> to vector<16x32xf32>
      %19 = arith.addf %16, %18 : vector<16x32xf32>
      %cst_19 = arith.constant 0.000000e+00 : f32
      %20 = vector.broadcast %cst_19 : f32 to vector<16x32xf32>
      %21 = arith.maximumf %19, %20 : vector<16x32xf32>
      %c0_20 = arith.constant 0 : index
      %c0_21 = arith.constant 0 : index
      %22 = vector.load %arg7[%c0_20, %c0_21] : memref<32x32xf32, #tpu.memory_space<vmem>>, vector<32x32xf32>
      %cst_22 = arith.constant dense<0.000000e+00> : vector<16x32xf32>
      %23 = tpu.matmul %21, %22, %cst_22 {dimension_numbers = #tpu.dot_dimension_numbers<[1], [0], [0], [1], [0, 0, 1, 1], [], []>} : vector<16x32xf32>, vector<32x32xf32>, vector<16x32xf32> -> vector<16x32xf32>
      %c0_23 = arith.constant 0 : index
      %c0_24 = arith.constant 0 : index
      %24 = vector.load %arg8[%c0_23, %c0_24] : memref<1x32xf32, #tpu.memory_space<vmem>>, vector<1x32xf32>
      %25 = vector.broadcast %24 : vector<1x32xf32> to vector<16x32xf32>
      %26 = arith.addf %23, %25 : vector<16x32xf32>
      %27 = arith.addf %12, %26 : vector<16x32xf32>
      %c0_25 = arith.constant 0 : index
      %c0_26 = arith.constant 0 : index
      %28 = vector.load %arg9[%c0_25, %c0_26] : memref<16x32xf32, #tpu.memory_space<vmem>>, vector<16x32xf32>
      tpu.vector_store %arg9[%c0_25, %c0_26], %27 {strides = array<i32>} : memref<16x32xf32, #tpu.memory_space<vmem>>, vector<16x32xf32>,
    } else {
    }
    return
  }
  func.func @transform_0(%arg0: i32, %arg1: i32) -> (i32, i32) {
    %c0_i32 = arith.constant 0 : i32
    %c0_i32_0 = arith.constant 0 : i32
    return %arg0, %c0_i32 : i32, i32
  }
  func.func @transform_1(%arg0: i32, %arg1: i32) -> (i32, i32) {
    %c0_i32 = arith.constant 0 : i32
    return %arg0, %arg1 : i32, i32
  }
  func.func @transform_2(%arg0: i32, %arg1: i32) -> (i32, i32) {
    %c0_i32 = arith.constant 0 : i32
    %c0_i32_0 = arith.constant 0 : i32
    return %arg1, %c0_i32 : i32, i32
  }
  func.func @transform_3(%arg0: i32, %arg1: i32) -> (i32, i32) {
    %c0_i32 = arith.constant 0 : i32
    %c0_i32_0 = arith.constant 0 : i32
    %c0_i32_1 = arith.constant 0 : i32
    return %c0_i32, %c0_i32_0 : i32, i32
  }
  func.func @transform_4(%arg0: i32, %arg1: i32) -> (i32, i32) {
    %c0_i32 = arith.constant 0 : i32
    %c0_i32_0 = arith.constant 0 : i32
    %c0_i32_1 = arith.constant 0 : i32
    return %c0_i32, %c0_i32_0 : i32, i32
  }
  func.func @transform_5(%arg0: i32, %arg1: i32) -> (i32, i32) {
    %c0_i32 = arith.constant 0 : i32
    %c0_i32_0 = arith.constant 0 : i32
    %c0_i32_1 = arith.constant 0 : i32
    return %c0_i32, %c0_i32_0 : i32, i32
  }
  func.func @transform_6(%arg0: i32, %arg1: i32) -> (i32, i32) {
    %c0_i32 = arith.constant 0 : i32
    %c0_i32_0 = arith.constant 0 : i32
    %c0_i32_1 = arith.constant 0 : i32
    return %c0_i32, %c0_i32_0 : i32, i32
  }
  func.func @transform_7(%arg0: i32, %arg1: i32) -> (i32, i32) {
    %c0_i32 = arith.constant 0 : i32
    %c0_i32_0 = arith.constant 0 : i32
    return %arg0, %c0_i32 : i32, i32
  }
}

</mosaic_0001>

<llo_original>
// kernel: tpu_custom_call.1
$region0: #{tpu_custom_call.1}
  #allocation0 [shape = 'u32[]', space=smem, size = 0x4, offset = 0x4, fixed_abs, tag = 'smem constant byte address 0x4 - core index']
  #allocation1 [shape = 'u32[144,128]{1,0:T(1,128)}', space=vmem, size = 0x12000, scoped, tag = 'internal scratch']
  #allocation2 [shape = 'f32[16,32]{1,0:T(8,128)}', space=vmem, size = 0x2000, scoped, tag = 'scratch operand']
  %s0 = inlined_call_operand.hbm [shape: f32[16,32], index: 0, kind: input, shape index: {}]
  %s1 = inlined_call_operand.hbm [shape: bf16[16,16], index: 1, kind: input, shape index: {}]
  %s2 = inlined_call_operand.hbm [shape: bf16[16,32], index: 2, kind: input, shape index: {}]
  %s3 = inlined_call_operand.hbm [shape: f32[32,32], index: 3, kind: input, shape index: {}]
  %s4 = inlined_call_operand.vmem [shape: f32[1,32], index: 4, kind: input, shape index: {}]
  %s5 = inlined_call_operand.hbm [shape: f32[32,32], index: 5, kind: input, shape index: {}]
  %s6 = inlined_call_operand.vmem [shape: f32[1,32], index: 6, kind: input, shape index: {}]
  %s7 = inlined_call_operand.hbm [shape: f32[16,32], index: 7, kind: output, shape index: {}]
  %s8 = sld [smem:[#allocation0]]
  $region66: #{tpu_custom_call.1} parent=0
    _
  %s10 = ssub.s32 1, %s8
  %s11 = scalar_select 0, %s10, %s8
  $region1: #{tpu_custom_call.1} parent=0
    #allocation3 [shape = 'u8[8192]{0}', space=vmem, size = 0x2000, scoped, tag = 'input window, operand 0, single buffered']
    #allocation4 [shape = 's32[1]{0}', space=sflag, size = 0x4, scoped, tag = 'scoped memory for tpu_custom_call.1']
    #allocation5 [shape = 's32[1]{0}', space=sflag, size = 0x4, scoped, tag = 'scoped memory for tpu_custom_call.1']
    #allocation6 [shape = 'u8[4096]{0}', space=vmem, size = 0x1000, scoped, tag = 'input window, operand 1, single buffered']
    #allocation7 [shape = 's32[1]{0}', space=sflag, size = 0x4, scoped, tag = 'scoped memory for tpu_custom_call.1']
    #allocation8 [shape = 'u8[4096]{0}', space=vmem, size = 0x1000, scoped, tag = 'input window, operand 2, single buffered']
    #allocation9 [shape = 'u8[16384]{0}', space=vmem, size = 0x4000, scoped, tag = 'input window, operand 3, single buffered']
    #allocation10 [shape = 's32[1]{0}', space=sflag, size = 0x4, scoped, tag = 'scoped memory for tpu_custom_call.1']
    #allocation11 [shape = 'u8[16384]{0}', space=vmem, size = 0x4000, scoped, tag = 'input window, operand 5, single buffered']
    #allocation12 [shape = 'u8[8192]{0}', space=vmem, size = 0x2000, scoped, tag = 'output window, operand 0, single buffered']
    %12 = vsyncpa [#allocation4], 0
    %13 = vsyncpa [#allocation7], 0
    %14 = vsyncpa [#allocation10], 0
    %15 = vsyncpa [#allocation5], 0
    // Predicated region
    $region2: #{tpu_custom_call.1} parent=1 // pred_check
      _
    $region3: #{tpu_custom_call.1} parent=1 // pred_check_branch
      %17 = sbr.rel (0) target = $region5
    $region4: #{tpu_custom_call.1} parent=1 // pred_region
      %s19 = ssub.s32 256, 256
      %20 = vsyncadd [#allocation4], %s19
      %s21 = sshll.u32 [#allocation3], 4
      %s22 = int_to_ptr.vmem [resolvable:$true] %s21
      %27 = dma.hbm_to_vmem [thread:$0]  %s0, 256, %s22, [#allocation4], 128, 128, 8
    $region5: #{tpu_custom_call.1} parent=1 // pred_fallthru
      _
    // Predicated region
    $region6: #{tpu_custom_call.1} parent=1 // pred_check
      _
    $region7: #{tpu_custom_call.1} parent=1 // pred_check_branch
      %29 = sbr.rel (0) target = $region9
    $region8: #{tpu_custom_call.1} parent=1 // pred_region
      %s31 = ssub.s32 128, 128
      %32 = vsyncadd [#allocation7], %s31
      %s33 = sshll.u32 [#allocation6], 4
      %s34 = int_to_ptr.vmem [resolvable:$true] %s33
      %39 = dma.hbm_to_vmem [thread:$0]  %s1, 128, %s34, [#allocation7], 64, 64, 4
    $region9: #{tpu_custom_call.1} parent=1 // pred_fallthru
      _
    // Predicated region
    $region10: #{tpu_custom_call.1} parent=1 // pred_check
      _
    $region11: #{tpu_custom_call.1} parent=1 // pred_check_branch
      %41 = sbr.rel (0) target = $region13
    $region12: #{tpu_custom_call.1} parent=1 // pred_region
      %s43 = ssub.s32 128, 128
      %44 = vsyncadd [#allocation7], %s43
      %s45 = sshll.u32 [#allocation8], 4
      %s46 = int_to_ptr.vmem [resolvable:$true] %s45
      %51 = dma.hbm_to_vmem [thread:$0]  %s2, 128, %s46, [#allocation7], 64, 64, 4
    $region13: #{tpu_custom_call.1} parent=1 // pred_fallthru
      _
    // Predicated region
    $region14: #{tpu_custom_call.1} parent=1 // pred_check
      _
    $region15: #{tpu_custom_call.1} parent=1 // pred_check_branch
      %53 = sbr.rel (0) target = $region17
    $region16: #{tpu_custom_call.1} parent=1 // pred_region
      %s55 = ssub.s32 512, 512
      %56 = vsyncadd [#allocation10], %s55
      %s57 = sshll.u32 [#allocation9], 4
      %s58 = int_to_ptr.vmem [resolvable:$true] %s57
      %63 = dma.hbm_to_vmem [thread:$0]  %s3, 512, %s58, [#allocation10], 128, 128, 8
    $region17: #{tpu_custom_call.1} parent=1 // pred_fallthru
      _
    // Predicated region
    $region18: #{tpu_custom_call.1} parent=1 // pred_check
      _
    $region19: #{tpu_custom_call.1} parent=1 // pred_check_branch
      %65 = sbr.rel (0) target = $region21
    $region20: #{tpu_custom_call.1} parent=1 // pred_region
      _
    $region21: #{tpu_custom_call.1} parent=1 // pred_fallthru
      _
    // Predicated region
    $region22: #{tpu_custom_call.1} parent=1 // pred_check
      _
    $region23: #{tpu_custom_call.1} parent=1 // pred_check_branch
      %67 = sbr.rel (0) target = $region25
    $region24: #{tpu_custom_call.1} parent=1 // pred_region
      %s69 = ssub.s32 512, 512
      %70 = vsyncadd [#allocation10], %s69
      %s71 = sshll.u32 [#allocation11], 4
      %s72 = int_to_ptr.vmem [resolvable:$true] %s71
      %77 = dma.hbm_to_vmem [thread:$0]  %s5, 512, %s72, [#allocation10], 128, 128, 8
    $region25: #{tpu_custom_call.1} parent=1 // pred_fallthru
      _
    // Predicated region
    $region26: #{tpu_custom_call.1} parent=1 // pred_check
      _
    $region27: #{tpu_custom_call.1} parent=1 // pred_check_branch
      %79 = sbr.rel (0) target = $region29
    $region28: #{tpu_custom_call.1} parent=1 // pred_region
      _
    $region29: #{tpu_custom_call.1} parent=1 // pred_fallthru
      _
    // Predicated region
    $region30: #{tpu_custom_call.1} parent=1 // pred_check
      _
    $region31: #{tpu_custom_call.1} parent=1 // pred_check_branch
      %81 = sbr.rel (0) target = $region33
    $region32: #{tpu_custom_call.1} parent=1 // pred_region
      %82 = dma.done [#allocation4], 256
    $region33: #{tpu_custom_call.1} parent=1 // pred_fallthru
      _
    // Predicated region
    $region34: #{tpu_custom_call.1} parent=1 // pred_check
      _
    $region35: #{tpu_custom_call.1} parent=1 // pred_check_branch
      %84 = sbr.rel (0) target = $region37
    $region36: #{tpu_custom_call.1} parent=1 // pred_region
      %85 = dma.done [#allocation7], 128
    $region37: #{tpu_custom_call.1} parent=1 // pred_fallthru
      _
    // Predicated region
    $region38: #{tpu_custom_call.1} parent=1 // pred_check
      _
    $region39: #{tpu_custom_call.1} parent=1 // pred_check_branch
      %87 = sbr.rel (0) target = $region41
    $region40: #{tpu_custom_call.1} parent=1 // pred_region
      %88 = dma.done [#allocation7], 128
    $region41: #{tpu_custom_call.1} parent=1 // pred_fallthru
      _
    // Predicated region
    $region42: #{tpu_custom_call.1} parent=1 // pred_check
      _
    $region43: #{tpu_custom_call.1} parent=1 // pred_check_branch
      %90 = sbr.rel (0) target = $region45
    $region44: #{tpu_custom_call.1} parent=1 // pred_region
      %91 = dma.done [#allocation10], 512
    $region45: #{tpu_custom_call.1} parent=1 // pred_fallthru
      _
    // Predicated region
    $region46: #{tpu_custom_call.1} parent=1 // pred_check
      _
    $region47: #{tpu_custom_call.1} parent=1 // pred_check_branch
      %93 = sbr.rel (0) target = $region49
    $region48: #{tpu_custom_call.1} parent=1 // pred_region
      %94 = dma.done [#allocation10], 512
    $region49: #{tpu_custom_call.1} parent=1 // pred_fallthru
      _
    %p96 = scmp.eq.s32.totalorder 0, 0
    // Predicated region
    $region50: #{tpu_custom_call.1} parent=1 // pred_check
      %p97 = pneg %p96
    $region51: #{tpu_custom_call.1} parent=1 // pred_check_branch
      %99 = sbr.rel (%p97) target = $region53
    $region52: #{tpu_custom_call.1} parent=1 // pred_region
      %vm100 = vcmask 261120
      %101 = vst.msk [vmem:[#allocation2] sm:$0xff] %vm100, 0.0
      %102 = vst.msk [vmem:[#allocation2 + $0x8] sm:$0xff] %vm100, 0.0
    $region53: #{tpu_custom_call.1} parent=1 // pred_fallthru
      _
    %v103 = vld [vmem:[#allocation2] sm:$0xff]
    %v104 = vld [vmem:[#allocation2 + $0x8] sm:$0xff]
    %v105 = vld [vmem:[#allocation6] sm:$0xf]
    %v106 = vld [vmem:[#allocation6 + $0x4] sm:$0xf]
    %v107 = vld [vmem:[#allocation8] sm:$0xf]
    %v108 = vld [vmem:[#allocation8 + $0x4] sm:$0xf]
    %v111 = vunpack.c.l.b16 %v105
    %v112 = vunpack.c.l.b16 %v106
    %v113 = vpack.c.b16 %v112, %v111
    %v116 = vunpack.c.l.b16 %v107
    %v117 = vunpack.c.l.b16 %v108
    %v118 = vpack.c.b16 %v117, %v116
    %vm120 = vcmask 130048
    %v122 = vsel %vm120, %v113, 0
    %124 = vmatprep.subr.bf16.mxu0 0
    %125 = vmatpush1.bf16.msra.mxu0 0
    %126 = vmatprep.subr.bf16.mxu0 0
    %127 = vmatpush1.bf16.msra.mxu0 0
    %128 = vmatprep.subr.bf16.mxu0 0
    %129 = vmatpush1.bf16.msra.mxu0 0
    %130 = vmatprep.subr.bf16.mxu0 0
    %131 = vmatpush1.bf16.msra.mxu0 0
    %132 = vmatprep.subr.bf16.mxu0 0
    %133 = vmatpush1.bf16.msra.mxu0 0
    %134 = vmatprep.subr.bf16.mxu0 0
    %135 = vmatpush1.bf16.msra.mxu0 0
    %136 = vmatprep.subr.bf16.mxu0 0
    %137 = vmatpush1.bf16.msra.mxu0 0
    %138 = vmatprep.subr.bf16.mxu0 0
    %139 = vmatpush1.bf16.msra.mxu0 %v118
    %140 = vmatprep.subr.bf16.mxu0 0
    %141 = vmatpush2.bf16.msra.mxu0 0
    %142 = vmatprep.subr.bf16.mxu0 0
    %143 = vmatpush2.bf16.msra.mxu0 0
    %144 = vmatprep.subr.bf16.mxu0 0
    %145 = vmatpush2.bf16.msra.mxu0 0
    %146 = vmatprep.subr.bf16.mxu0 0
    %147 = vmatpush2.bf16.msra.mxu0 0
    %148 = vmatprep.subr.bf16.mxu0 0
    %149 = vmatpush2.bf16.msra.mxu0 0
    %150 = vmatprep.subr.bf16.mxu0 0
    %151 = vmatpush2.bf16.msra.mxu0 0
    %152 = vmatprep.subr.bf16.mxu0 0
    %153 = vmatpush2.bf16.msra.mxu0 0
    %154 = vmatprep.subr.bf16.mxu0 0
    %155 = vmatpush2.bf16.msra.mxu0 0
    %156 = vmatprep.mubr.bf16.mxu0 0
    %157 = vmatmul.mubr.bf16.gmra.mxu0 %v122
    %v158 = vpop.f32.mrf.mxu0
    %v159 = vadd.f32 0.0, %v158
    %v160 = vpop.f32.mrf.mxu0
    %v161 = vpop.f32.mrf.mxu0
    %v162 = vadd.f32 0.0, %v161
    %v163 = vpop.f32.mrf.mxu0
    %164 = vdwg.mxu0
    %v165 = vadd.f32 %v103, %v159
    %v166 = vadd.f32 %v104, %v162
    %vm167 = vcmask 261120
    %168 = vst.msk [vmem:[#allocation2] sm:$0xff] %vm167, %v165
    %169 = vst.msk [vmem:[#allocation2 + $0x8] sm:$0xff] %vm167, %v166
    // Predicated region
    $region54: #{tpu_custom_call.1} parent=1 // pred_check
      %p170 = pneg %p96
    $region55: #{tpu_custom_call.1} parent=1 // pred_check_branch
      %172 = sbr.rel (%p170) target = $region57
    $region56: #{tpu_custom_call.1} parent=1 // pred_region
      %v173 = vld [vmem:[#allocation3] sm:$0xff]
      %v174 = vld [vmem:[#allocation3 + $0x8] sm:$0xff]
      %v175 = vld [vmem:[#allocation2] sm:$0xff]
      %v176 = vld [vmem:[#allocation2 + $0x8] sm:$0xff]
      %v177 = vadd.f32 %v173, %v175
      %v178 = vadd.f32 %v174, %v176
      %v179 = vld [vmem:[#allocation9] sm:$0xff]
      %v180 = vld [vmem:[#allocation9 + $0x8] sm:$0xff]
      %v181 = vld [vmem:[#allocation9 + $0x10] sm:$0xff]
      %v182 = vld [vmem:[#allocation9 + $0x18] sm:$0xff]
      %v183 = vld [vmem:[%s4] sm:$0x1]
      %v185 = vlaneseq
      %v186 = vshrl.u32 %v185, 7
      %v187 = vsub.s32 0, %v186
      %v188 = vrot.slane %v183, %v187
      %v191 = vsel %vm167, %v177, 0
      %v194 = vsel %vm167, %v178, 0
      %196 = vmatprep.subr.mxu0 0.0
      %197 = vmatpush1.msra.mxu0 0.0
      %198 = vmatprep.subr.mxu0 0.0
      %199 = vmatpush1.msra.mxu0 0.0
      %200 = vmatprep.subr.mxu0 0.0
      %201 = vmatpush1.msra.mxu0 0.0
      %202 = vmatprep.subr.mxu0 0.0
      %203 = vmatpush1.msra.mxu0 0.0
      %204 = vmatprep.subr.mxu0 0.0
      %205 = vmatpush1.msra.mxu0 0.0
      %206 = vmatprep.subr.mxu0 0.0
      %207 = vmatpush1.msra.mxu0 0.0
      %208 = vmatprep.subr.mxu0 0.0
      %209 = vmatpush1.msra.mxu0 0.0
      %210 = vmatprep.subr.mxu0 0.0
      %211 = vmatpush1.msra.mxu0 0.0
      %212 = vmatprep.subr.mxu0 0.0
      %213 = vmatpush1.msra.mxu0 0.0
      %214 = vmatprep.subr.mxu0 0.0
      %215 = vmatpush1.msra.mxu0 0.0
      %216 = vmatprep.subr.mxu0 0.0
      %217 = vmatpush1.msra.mxu0 0.0
      %218 = vmatprep.subr.mxu0 0.0
      %219 = vmatpush1.msra.mxu0 0.0
      %220 = vmatprep.subr.mxu0 0.0
      %221 = vmatpush1.msra.mxu0 %v182
      %222 = vmatprep.subr.mxu0 0.0
      %223 = vmatpush1.msra.mxu0 %v181
      %224 = vmatprep.subr.mxu0 0.0
      %225 = vmatpush1.msra.mxu0 %v180
      %226 = vmatprep.subr.mxu0 0.0
      %227 = vmatpush1.msra.mxu0 %v179
      %228 = vmatprep.subr.mxu0 0.0
      %229 = vmatpush2.msra.mxu0 0.0
      %230 = vmatprep.subr.mxu0 0.0
      %231 = vmatpush2.msra.mxu0 0.0
      %232 = vmatprep.subr.mxu0 0.0
      %233 = vmatpush2.msra.mxu0 0.0
      %234 = vmatprep.subr.mxu0 0.0
      %235 = vmatpush2.msra.mxu0 0.0
      %236 = vmatprep.subr.mxu0 0.0
      %237 = vmatpush2.msra.mxu0 0.0
      %238 = vmatprep.subr.mxu0 0.0
      %239 = vmatpush2.msra.mxu0 0.0
      %240 = vmatprep.subr.mxu0 0.0
      %241 = vmatpush2.msra.mxu0 0.0
      %242 = vmatprep.subr.mxu0 0.0
      %243 = vmatpush2.msra.mxu0 0.0
      %244 = vmatprep.subr.mxu0 0.0
      %245 = vmatpush2.msra.mxu0 0.0
      %246 = vmatprep.subr.mxu0 0.0
      %247 = vmatpush2.msra.mxu0 0.0
      %248 = vmatprep.subr.mxu0 0.0
      %249 = vmatpush2.msra.mxu0 0.0
      %250 = vmatprep.subr.mxu0 0.0
      %251 = vmatpush2.msra.mxu0 0.0
      %252 = vmatprep.subr.mxu0 0.0
      %253 = vmatpush2.msra.mxu0 0.0
      %254 = vmatprep.subr.mxu0 0.0
      %255 = vmatpush2.msra.mxu0 0.0
      %256 = vmatprep.subr.mxu0 0.0
      %257 = vmatpush2.msra.mxu0 0.0
      %258 = vmatprep.subr.mxu0 0.0
      %259 = vmatpush2.msra.mxu0 0.0
      %260 = vmatprep.mubr.f32.mxu0 0.0
      %261 = vmatmul.mubr.f32.gmra.mxu0 %v191
      %v262 = vpop.f32.mrf.mxu0
      %v263 = vadd.f32 %v188, %v262
      %v264 = vpop.f32.mrf.mxu0
      %265 = vmatprep.mubr.f32.mxu0 0.0
      %266 = vmatmul.mubr.f32.gmra.mxu0 %v194
      %v267 = vpop.f32.mrf.mxu0
      %v268 = vadd.f32 %v188, %v267
      %v269 = vpop.f32.mrf.mxu0
      %270 = vdwg.mxu0
      %v271 = vmax.f32 %v263, 0.0
      %v272 = vmax.f32 %v268, 0.0
      %v273 = vld [vmem:[#allocation11] sm:$0xff]
      %v274 = vld [vmem:[#allocation11 + $0x8] sm:$0xff]
      %v275 = vld [vmem:[#allocation11 + $0x10] sm:$0xff]
      %v276 = vld [vmem:[#allocation11 + $0x18] sm:$0xff]
      %v277 = vld [vmem:[%s6] sm:$0x1]
      %v279 = vlaneseq
      %v280 = vshrl.u32 %v279, 7
      %v281 = vsub.s32 0, %v280
      %v282 = vrot.slane %v277, %v281
      %v285 = vsel %vm167, %v271, 0
      %v288 = vsel %vm167, %v272, 0
      %290 = vmatprep.subr.mxu0 0.0
      %291 = vmatpush1.msra.mxu0 0.0
      %292 = vmatprep.subr.mxu0 0.0
      %293 = vmatpush1.msra.mxu0 0.0
      %294 = vmatprep.subr.mxu0 0.0
      %295 = vmatpush1.msra.mxu0 0.0
      %296 = vmatprep.subr.mxu0 0.0
      %297 = vmatpush1.msra.mxu0 0.0
      %298 = vmatprep.subr.mxu0 0.0
      %299 = vmatpush1.msra.mxu0 0.0
      %300 = vmatprep.subr.mxu0 0.0
      %301 = vmatpush1.msra.mxu0 0.0
      %302 = vmatprep.subr.mxu0 0.0
      %303 = vmatpush1.msra.mxu0 0.0
      %304 = vmatprep.subr.mxu0 0.0
      %305 = vmatpush1.msra.mxu0 0.0
      %306 = vmatprep.subr.mxu0 0.0
      %307 = vmatpush1.msra.mxu0 0.0
      %308 = vmatprep.subr.mxu0 0.0
      %309 = vmatpush1.msra.mxu0 0.0
      %310 = vmatprep.subr.mxu0 0.0
      %311 = vmatpush1.msra.mxu0 0.0
      %312 = vmatprep.subr.mxu0 0.0
      %313 = vmatpush1.msra.mxu0 0.0
      %314 = vmatprep.subr.mxu0 0.0
      %315 = vmatpush1.msra.mxu0 %v276
      %316 = vmatprep.subr.mxu0 0.0
      %317 = vmatpush1.msra.mxu0 %v275
      %318 = vmatprep.subr.mxu0 0.0
      %319 = vmatpush1.msra.mxu0 %v274
      %320 = vmatprep.subr.mxu0 0.0
      %321 = vmatpush1.msra.mxu0 %v273
      %322 = vmatprep.subr.mxu0 0.0
      %323 = vmatpush2.msra.mxu0 0.0
      %324 = vmatprep.subr.mxu0 0.0
      %325 = vmatpush2.msra.mxu0 0.0
      %326 = vmatprep.subr.mxu0 0.0
      %327 = vmatpush2.msra.mxu0 0.0
      %328 = vmatprep.subr.mxu0 0.0
      %329 = vmatpush2.msra.mxu0 0.0
      %330 = vmatprep.subr.mxu0 0.0
      %331 = vmatpush2.msra.mxu0 0.0
      %332 = vmatprep.subr.mxu0 0.0
      %333 = vmatpush2.msra.mxu0 0.0
      %334 = vmatprep.subr.mxu0 0.0
      %335 = vmatpush2.msra.mxu0 0.0
      %336 = vmatprep.subr.mxu0 0.0
      %337 = vmatpush2.msra.mxu0 0.0
      %338 = vmatprep.subr.mxu0 0.0
      %339 = vmatpush2.msra.mxu0 0.0
      %340 = vmatprep.subr.mxu0 0.0
      %341 = vmatpush2.msra.mxu0 0.0
      %342 = vmatprep.subr.mxu0 0.0
      %343 = vmatpush2.msra.mxu0 0.0
      %344 = vmatprep.subr.mxu0 0.0
      %345 = vmatpush2.msra.mxu0 0.0
      %346 = vmatprep.subr.mxu0 0.0
      %347 = vmatpush2.msra.mxu0 0.0
      %348 = vmatprep.subr.mxu0 0.0
      %349 = vmatpush2.msra.mxu0 0.0
      %350 = vmatprep.subr.mxu0 0.0
      %351 = vmatpush2.msra.mxu0 0.0
      %352 = vmatprep.subr.mxu0 0.0
      %353 = vmatpush2.msra.mxu0 0.0
      %354 = vmatprep.mubr.f32.mxu0 0.0
      %355 = vmatmul.mubr.f32.gmra.mxu0 %v285
      %v356 = vpop.f32.mrf.mxu0
      %v357 = vadd.f32 %v282, %v356
      %v358 = vpop.f32.mrf.mxu0
      %359 = vmatprep.mubr.f32.mxu0 0.0
      %360 = vmatmul.mubr.f32.gmra.mxu0 %v288
      %v361 = vpop.f32.mrf.mxu0
      %v362 = vadd.f32 %v282, %v361
      %v363 = vpop.f32.mrf.mxu0
      %364 = vdwg.mxu0
      %v365 = vadd.f32 %v173, %v357
      %v366 = vadd.f32 %v174, %v362
      %367 = vst.msk [vmem:[#allocation12] sm:$0xff] %vm167, %v365
      %368 = vst.msk [vmem:[#allocation12 + $0x8] sm:$0xff] %vm167, %v366
    $region57: #{tpu_custom_call.1} parent=1 // pred_fallthru
      _
    // Predicated region
    $region58: #{tpu_custom_call.1} parent=1 // pred_check
      _
    $region59: #{tpu_custom_call.1} parent=1 // pred_check_branch
      %370 = sbr.rel (0) target = $region61
    $region60: #{tpu_custom_call.1} parent=1 // pred_region
      %s372 = ssub.s32 256, 256
      %373 = vsyncadd [#allocation5], %s372
      %s374 = sshll.u32 [#allocation12], 4
      %s375 = int_to_ptr.vmem [resolvable:$true] %s374
      %380 = dma.vmem_to_hbm [thread:$0]  %s375, 256, %s7, [#allocation5], 128, 128, 8
    $region61: #{tpu_custom_call.1} parent=1 // pred_fallthru
      _
    // Predicated region
    $region62: #{tpu_custom_call.1} parent=1 // pred_check
      _
    $region63: #{tpu_custom_call.1} parent=1 // pred_check_branch
      %382 = sbr.rel (0) target = $region65
    $region64: #{tpu_custom_call.1} parent=1 // pred_region
      %383 = dma.done [#allocation5], 256
    $region65: #{tpu_custom_call.1} parent=1 // pred_fallthru
      _
    %384 = vsyncpa [#allocation4], 1
    %385 = vsyncpa [#allocation7], 1
    %386 = vsyncpa [#allocation10], 1
    %387 = vsyncpa [#allocation5], 1

</llo_original>
